<compile_context>
chip_gen: v6e
topology: v6e:2x2x1
jax: 0.10.0
libtpu: 0.0.40
codegen_flags: <defaults>
</compile_context>

<pallas_src>
import jax
import jax.numpy as jnp
import numpy as np
from jax import lax
from jax.experimental import pallas as pl
from jax.experimental.pallas import tpu as pltpu


# -----------------------------------------------------------------------------
# Kernel.  Grid = (num_r_tiles, n_sys); system axis is fastest.
#   sis_off_ref  : SMEM int32[n_sys+1]   per-system [start, end) into SIS table
#   pemd_off_ref : SMEM int32[n_sys+1]   per-system [start, end) into PEMD table
#   sis_par_ref  : SMEM f32[3, C_sis]    rows = (x0, y0, theta_E)
#   pemd_par_ref : SMEM f32[4, C_pemd]   rows = (x0, y0, theta_E**(g-1), 0.5*(1-g))
#   grid_ref     : VMEM f32[2, r_tile, 128]   lens-plane coords tile
#   out_ref      : VMEM f32[2, r_tile, 128]   source-plane coords tile (system s)
#   ax_ref/ay_ref: VMEM f32[r_tile, 128]      deflection accumulators (scratch)
# -----------------------------------------------------------------------------
def _lens_kernel(sis_off_ref, pemd_off_ref, sis_par_ref, pemd_par_ref,
                 grid_ref, out_ref, ax_ref, ay_ref):
    s = pl.program_id(1)                 # current system

    gx = grid_ref[0]                     # (r_tile, 128)
    gy = grid_ref[1]

    ax_ref[...] = jnp.zeros_like(ax_ref)
    ay_ref[...] = jnp.zeros_like(ay_ref)

    eps = jnp.float32(1e-12)             # softening on r^2

    # ---- SIS components of this system: alpha = theta_E * (dx,dy)/r  --------
    def sis_body(c, carry):
        x0 = sis_par_ref[0, c]
        y0 = sis_par_ref[1, c]
        te = sis_par_ref[2, c]
        dx = gx - x0
        dy = gy - y0
        r2 = dx * dx + dy * dy + eps
        scale = te * lax.rsqrt(r2)       # single EUP op / point / component
        ax_ref[...] += scale * dx
        ay_ref[...] += scale * dy
        return carry

    lax.fori_loop(sis_off_ref[s], sis_off_ref[s + 1], sis_body, 0)

    # ---- PEMD (circular power-law): alpha/r = te^(g-1) * r^(1-g) ------------
    def pemd_body(c, carry):
        x0 = pemd_par_ref[0, c]
        y0 = pemd_par_ref[1, c]
        coef = pemd_par_ref[2, c]        # theta_E ** (gamma - 1), precomputed
        pexp = pemd_par_ref[3, c]        # 0.5 * (1 - gamma), precomputed
        dx = gx - x0
        dy = gy - y0
        r2 = dx * dx + dy * dy + eps
        scale = coef * jnp.exp(pexp * jnp.log(r2))   # log + exp only
        ax_ref[...] += scale * dx
        ay_ref[...] += scale * dy
        return carry

    lax.fori_loop(pemd_off_ref[s], pemd_off_ref[s + 1], pemd_body, 0)

    # source_grid = lens_grid - total_deflection  (direct channel stores)
    out_ref[0] = gx - ax_ref[...]
    out_ref[1] = gy - ay_ref[...]


def _lens_pallas_call(sis_off, pemd_off, sis_par, pemd_par, grid3, n_sys, r_tile):
    two, R, L = grid3.shape
    assert two == 2 and L == 128 and R % r_tile == 0
    n_r_tiles = R // r_tile
    return pl.pallas_call(
        _lens_kernel,
        out_shape=jax.ShapeDtypeStruct((n_sys, 2, R, 128), jnp.float32),
        grid=(n_r_tiles, n_sys),
        in_specs=[
            pl.BlockSpec(memory_space=pltpu.MemorySpace.SMEM),   # sis offsets
            pl.BlockSpec(memory_space=pltpu.MemorySpace.SMEM),   # pemd offsets
            pl.BlockSpec(memory_space=pltpu.MemorySpace.SMEM),   # sis params
            pl.BlockSpec(memory_space=pltpu.MemorySpace.SMEM),   # pemd params
            pl.BlockSpec((2, r_tile, 128), lambda p, s: (0, p, 0)),
        ],
        out_specs=pl.BlockSpec((None, 2, r_tile, 128), lambda p, s: (s, 0, p, 0)),
        scratch_shapes=[
            pltpu.VMEM((r_tile, 128), jnp.float32),
            pltpu.VMEM((r_tile, 128), jnp.float32),
        ],
        compiler_params=pltpu.CompilerParams(
            dimension_semantics=("parallel", "parallel"),
        ),
    )(sis_off, pemd_off, sis_par, pemd_par, grid3)


# -----------------------------------------------------------------------------
# JAX-side wrapper mirroring the PyTorch LensModel
# -----------------------------------------------------------------------------
class LensModel:
    def __init__(self, number_of_systems, masses_data, precomputed,
                 dtype=jnp.float32):
        self.dtype = dtype
        self.tot_number_of_systems = int(number_of_systems)
        # TODO(synk): `precomputed` params are plumbed into component classes in
        # the original code; those classes are not provided, so they are kept
        # only for interface parity and unused in the deflection math.
        self.precomputed = precomputed

        n_sys = self.tot_number_of_systems
        for t in masses_data:
            if t not in ('SIS', 'PEMD'):
                # TODO(synk): NFW / ExternalPotential classes were not provided.
                raise ValueError(f'Unknown component type: {t}')

        # ---- SIS group: sort by system, build offsets, columns = components
        if 'SIS' in masses_data:
            p = np.asarray(masses_data['SIS']['params'], np.float64)      # (C,3)
            si = np.asarray(masses_data['SIS']['sys_idx'], np.int64)
        else:
            p, si = np.zeros((0, 3), np.float64), np.zeros((0,), np.int64)
        if si.size:
            assert int(si.max()) < n_sys
        order = np.argsort(si, kind='stable')
        p, si = p[order], si[order]
        counts = np.bincount(si, minlength=n_sys)
        sis_off = np.zeros(n_sys + 1, np.int32)
        sis_off[1:] = np.cumsum(counts)
        sis_par = np.zeros((3, max(p.shape[0], 1)), np.float32)
        if p.shape[0]:
            sis_par[0, :p.shape[0]] = p[:, 0]
            sis_par[1, :p.shape[0]] = p[:, 1]
            sis_par[2, :p.shape[0]] = p[:, 2]

        # ---- PEMD group (circular power-law; gamma=2 would reduce to SIS)
        # TODO(synk): PEMD ellipticity/position-angle terms (original class not
        # provided) are approximated as a circular power-law profile.
        if 'PEMD' in masses_data:
            p = np.asarray(masses_data['PEMD']['params'], np.float64)     # (C,4)
            si = np.asarray(masses_data['PEMD']['sys_idx'], np.int64)
        else:
            p, si = np.zeros((0, 4), np.float64), np.zeros((0,), np.int64)
        if si.size:
            assert int(si.max()) < n_sys
        order = np.argsort(si, kind='stable')
        p, si = p[order], si[order]
        counts = np.bincount(si, minlength=n_sys)
        pemd_off = np.zeros(n_sys + 1, np.int32)
        pemd_off[1:] = np.cumsum(counts)
        pemd_par = np.zeros((4, max(p.shape[0], 1)), np.float32)
        if p.shape[0]:
            te, gamma = p[:, 2], p[:, 3]
            pemd_par[0, :p.shape[0]] = p[:, 0]
            pemd_par[1, :p.shape[0]] = p[:, 1]
            pemd_par[2, :p.shape[0]] = te ** (gamma - 1.0)   # host-precomputed
            pemd_par[3, :p.shape[0]] = 0.5 * (1.0 - gamma)   # host-precomputed

        self.sis_off = jnp.asarray(sis_off)
        self.pemd_off = jnp.asarray(pemd_off)
        self.sis_par = jnp.asarray(sis_par)
        self.pemd_par = jnp.asarray(pemd_par)

    def __call__(self, lens_grid, get_deflection=False):
        return self.forward(lens_grid, get_deflection)

    def forward(self, lens_grid, get_deflection=False):
        # TODO(synk): compute kept in float32 (v5e VPU/EUP have no bf16).
        two, H, W = lens_grid.shape
        assert two == 2
        P = H * W
        n_sys = self.tot_number_of_systems

        grid_flat = jnp.asarray(lens_grid, jnp.float32).reshape(2, P)

        # Reshape to (2, R, 128) with R a multiple of 8 (sublane-dense tiles).
        R = -(-P // 128)
        R8 = ((R + 7) // 8) * 8
        if R8 <= 1024:
            r_tile = R8
        else:
            r_tile = next(t for t in (1024, 512, 256, 128, 64, 32, 16, 8)
                          if R8 % t == 0)
        P_pad = R8 * 128
        if P_pad != P:
            grid_flat = jnp.pad(grid_flat, ((0, 0), (0, P_pad - P)), mode='edge')
        grid3 = grid_flat.reshape(2, R8, 128)

        out = _lens_pallas_call(self.sis_off, self.pemd_off,
                                self.sis_par, self.pemd_par,
                                grid3, n_sys, r_tile)
        out = out.reshape(n_sys, 2, P_pad)[:, :, :P].reshape(n_sys, 2, H, W)
        # Original PyTorch forward always returns the source grid.
        return out


# -----------------------------------------------------------------------------
# Independent float64 numpy reference for verification
# -----------------------------------------------------------------------------
def _reference_forward(lens_grid, masses_data, n_sys):
    eps = 1e-12
    lg = np.asarray(lens_grid, np.float64)
    gx, gy = lg[0], lg[1]
    total = np.zeros((n_sys, 2) + gx.shape, np.float64)
    if 'SIS' in masses_data:
        p = np.asarray(masses_data['SIS']['params'], np.float64)
        si = np.asarray(masses_data['SIS']['sys_idx'], np.int64)
        for c in range(p.shape[0]):
            x0, y0, te = p[c]
            dx, dy = gx - x0, gy - y0
            r2 = dx * dx + dy * dy + eps
            scale = te / np.sqrt(r2)
            total[si[c], 0] += scale * dx
            total[si[c], 1] += scale * dy
    if 'PEMD' in masses_data:
        p = np.asarray(masses_data['PEMD']['params'], np.float64)
        si = np.asarray(masses_data['PEMD']['sys_idx'], np.int64)
        for c in range(p.shape[0]):
            x0, y0, te, gamma = p[c]
            dx, dy = gx - x0, gy - y0
            r2 = dx * dx + dy * dy + eps
            scale = te ** (gamma - 1.0) * r2 ** (0.5 * (1.0 - gamma))
            total[si[c], 0] += scale * dx
            total[si[c], 1] += scale * dy
    return lg[None] - total


if __name__ == "__main__":
    key = jax.random.PRNGKey(0)
    k_sis, k_pemd = jax.random.split(key)

    H = W = 16
    n_sys = 4

    # lens-plane coordinate grid, channels-first (2, H, W)
    xs = jnp.linspace(-2.0, 2.0, W, dtype=jnp.float32)
    ys = jnp.linspace(-2.0, 2.0, H, dtype=jnp.float32)
    Y, X = jnp.meshgrid(ys, xs, indexing="ij")
    lens_grid = jnp.stack([X, Y], axis=0).astype(jnp.float32)   # (2, 16, 16)

    # deterministic synthetic flat-catalog mass components
    sis_centers = jax.random.uniform(k_sis, (3, 2), minval=-0.5, maxval=0.5)
    sis_te = jax.random.uniform(k_sis, (3, 1), minval=0.5, maxval=1.5)
    pemd_centers = jax.random.uniform(k_pemd, (2, 2), minval=-0.5, maxval=0.5)
    pemd_te = jax.random.uniform(k_pemd, (2, 1), minval=0.5, maxval=1.5)
    pemd_gamma = jax.random.uniform(k_pemd, (2, 1), minval=1.8, maxval=2.2)

    masses_data = {
        "SIS": {
            "params": jnp.concatenate([sis_centers, sis_te], axis=1),   # (3, 3)
            "sys_idx": jnp.array([0, 1, 3], jnp.int32),
        },
        "PEMD": {
            "params": jnp.concatenate([pemd_centers, pemd_te, pemd_gamma],
                                      axis=1),                          # (2, 4)
            "sys_idx": jnp.array([2, 1], jnp.int32),
        },
    }
    precomputed = {
        "params": jnp.zeros((n_sys, 2), jnp.float32),
        "param_map": {},
        "sys_idx": jnp.arange(n_sys, dtype=jnp.int32),
    }

    model = LensModel(n_sys, masses_data, precomputed)

    out = model(lens_grid)
    out = jax.block_until_ready(out)

    ref = _reference_forward(lens_grid, masses_data, n_sys)
    assert out.shape == (n_sys, 2, H, W)
    np.testing.assert_allclose(np.asarray(out, np.float64), ref,
                               rtol=2e-4, atol=2e-4)

    print("KERNEL_OK")
</pallas_src>

<mosaic_0001>
module attributes {stable_mosaic.version = 11 : i64} {
  func.func @_lens_kernel(%arg0: i32, %arg1: i32, %arg2: memref<5xi32, #tpu.memory_space<smem>>, %arg3: memref<5xi32, #tpu.memory_space<smem>>, %arg4: memref<3x3xf32, #tpu.memory_space<smem>>, %arg5: memref<4x2xf32, #tpu.memory_space<smem>>, %arg6: memref<2x8x128xf32, #tpu.memory_space<vmem>>, %arg7: memref<1x2x8x128xf32, #tpu.memory_space<vmem>>, %arg8: memref<8x128xf32, #tpu.memory_space<vmem>>, %arg9: memref<8x128xf32, #tpu.memory_space<vmem>>) attributes {dimension_semantics = [#tpu.dimension_semantics<parallel>, #tpu.dimension_semantics<parallel>], iteration_bounds = array<i64: 1, 4>, scalar_prefetch = 0 : i64, scratch_operands = 2 : i64, tpu.core_type = #tpu.core_type<tc>, window_params = [{transform_indices = @transform_0, window_bounds = array<i64: 5>}, {transform_indices = @transform_1, window_bounds = array<i64: 5>}, {transform_indices = @transform_2, window_bounds = array<i64: 3, 3>}, {transform_indices = @transform_3, window_bounds = array<i64: 4, 2>}, {transform_indices = @transform_4, window_bounds = array<i64: 2, 8, 128>}, {transform_indices = @transform_5, window_bounds = array<i64: 1, 2, 8, 128>}]} {
    %c0 = arith.constant 0 : index
    %c0_0 = arith.constant 0 : index
    %c0_1 = arith.constant 0 : index
    %0 = vector.load %arg6[%c0, %c0_0, %c0_1] : memref<2x8x128xf32, #tpu.memory_space<vmem>>, vector<1x8x128xf32>
    %1 = vector.shape_cast %0 : vector<1x8x128xf32> to vector<8x128xf32>
    %c1 = arith.constant 1 : index
    %c0_2 = arith.constant 0 : index
    %c0_3 = arith.constant 0 : index
    %2 = vector.load %arg6[%c1, %c0_2, %c0_3] : memref<2x8x128xf32, #tpu.memory_space<vmem>>, vector<1x8x128xf32>
    %3 = vector.shape_cast %2 : vector<1x8x128xf32> to vector<8x128xf32>
    %cst = arith.constant 0.000000e+00 : f32
    %4 = vector.broadcast %cst : f32 to vector<8x128xf32>
    %c0_4 = arith.constant 0 : index
    %c0_5 = arith.constant 0 : index
    %5 = vector.load %arg8[%c0_4, %c0_5] : memref<8x128xf32, #tpu.memory_space<vmem>>, vector<8x128xf32>
    tpu.vector_store %arg8[%c0_4, %c0_5], %4 {strides = array<i32>} : memref<8x128xf32, #tpu.memory_space<vmem>>, vector<8x128xf32>,
    %cst_6 = arith.constant 0.000000e+00 : f32
    %6 = vector.broadcast %cst_6 : f32 to vector<8x128xf32>
    %c0_7 = arith.constant 0 : index
    %c0_8 = arith.constant 0 : index
    %7 = vector.load %arg9[%c0_7, %c0_8] : memref<8x128xf32, #tpu.memory_space<vmem>>, vector<8x128xf32>
    tpu.vector_store %arg9[%c0_7, %c0_8], %6 {strides = array<i32>} : memref<8x128xf32, #tpu.memory_space<vmem>>, vector<8x128xf32>,
    %8 = arith.index_cast %arg1 : i32 to index
    %9 = memref.load %arg2[%8] : memref<5xi32, #tpu.memory_space<smem>>
    %c1_i32 = arith.constant 1 : i32
    %10 = arith.addi %arg1, %c1_i32 : i32
    %11 = arith.index_cast %10 : i32 to index
    %12 = memref.load %arg2[%11] : memref<5xi32, #tpu.memory_space<smem>>
    %c0_i32 = arith.constant 0 : i32
    %cst_9 = arith.constant 9.99999996E-13 : f32
    %13 = arith.subi %12, %9 : i32
    %14 = arith.addi %9, %13 : i32
    %c1_i32_10 = arith.constant 1 : i32
    scf.for %arg10 = %9 to %14 step %c1_i32_10  : i32 {
      %c0_27 = arith.constant 0 : index
      %32 = arith.index_cast %arg10 : i32 to index
      %33 = memref.load %arg4[%c0_27, %32] : memref<3x3xf32, #tpu.memory_space<smem>>
      %c1_28 = arith.constant 1 : index
      %34 = arith.index_cast %arg10 : i32 to index
      %35 = memref.load %arg4[%c1_28, %34] : memref<3x3xf32, #tpu.memory_space<smem>>
      %c2 = arith.constant 2 : index
      %36 = arith.index_cast %arg10 : i32 to index
      %37 = memref.load %arg4[%c2, %36] : memref<3x3xf32, #tpu.memory_space<smem>>
      %38 = vector.broadcast %33 : f32 to vector<8x128xf32>
      %39 = arith.subf %1, %38 : vector<8x128xf32>
      %40 = vector.broadcast %35 : f32 to vector<8x128xf32>
      %41 = arith.subf %3, %40 : vector<8x128xf32>
      %42 = arith.mulf %39, %39 : vector<8x128xf32>
      %43 = arith.mulf %41, %41 : vector<8x128xf32>
      %44 = arith.addf %42, %43 : vector<8x128xf32>
      %45 = vector.broadcast %cst_9 : f32 to vector<8x128xf32>
      %46 = arith.addf %44, %45 : vector<8x128xf32>
      %47 = math.rsqrt %46 : vector<8x128xf32>
      %48 = vector.broadcast %37 : f32 to vector<8x128xf32>
      %49 = arith.mulf %48, %47 : vector<8x128xf32>
      %c0_29 = arith.constant 0 : index
      %c0_30 = arith.constant 0 : index
      %50 = vector.load %arg8[%c0_29, %c0_30] : memref<8x128xf32, #tpu.memory_space<vmem>>, vector<8x128xf32>
      %51 = arith.mulf %49, %39 : vector<8x128xf32>
      %52 = arith.addf %50, %51 : vector<8x128xf32>
      %c0_31 = arith.constant 0 : index
      %c0_32 = arith.constant 0 : index
      %53 = vector.load %arg8[%c0_31, %c0_32] : memref<8x128xf32, #tpu.memory_space<vmem>>, vector<8x128xf32>
      tpu.vector_store %arg8[%c0_31, %c0_32], %52 {strides = array<i32>} : memref<8x128xf32, #tpu.memory_space<vmem>>, vector<8x128xf32>,
      %c0_33 = arith.constant 0 : index
      %c0_34 = arith.constant 0 : index
      %54 = vector.load %arg9[%c0_33, %c0_34] : memref<8x128xf32, #tpu.memory_space<vmem>>, vector<8x128xf32>
      %55 = arith.mulf %49, %41 : vector<8x128xf32>
      %56 = arith.addf %54, %55 : vector<8x128xf32>
      %c0_35 = arith.constant 0 : index
      %c0_36 = arith.constant 0 : index
      %57 = vector.load %arg9[%c0_35, %c0_36] : memref<8x128xf32, #tpu.memory_space<vmem>>, vector<8x128xf32>
      tpu.vector_store %arg9[%c0_35, %c0_36], %56 {strides = array<i32>} : memref<8x128xf32, #tpu.memory_space<vmem>>, vector<8x128xf32>,
    }
    %15 = arith.index_cast %arg1 : i32 to index
    %16 = memref.load %arg3[%15] : memref<5xi32, #tpu.memory_space<smem>>
    %c1_i32_11 = arith.constant 1 : i32
    %17 = arith.addi %arg1, %c1_i32_11 : i32
    %18 = arith.index_cast %17 : i32 to index
    %19 = memref.load %arg3[%18] : memref<5xi32, #tpu.memory_space<smem>>
    %c0_i32_12 = arith.constant 0 : i32
    %cst_13 = arith.constant 9.99999996E-13 : f32
    %20 = arith.subi %19, %16 : i32
    %21 = arith.addi %16, %20 : i32
    %c1_i32_14 = arith.constant 1 : i32
    scf.for %arg10 = %16 to %21 step %c1_i32_14  : i32 {
      %c0_27 = arith.constant 0 : index
      %32 = arith.index_cast %arg10 : i32 to index
      %33 = memref.load %arg5[%c0_27, %32] : memref<4x2xf32, #tpu.memory_space<smem>>
      %c1_28 = arith.constant 1 : index
      %34 = arith.index_cast %arg10 : i32 to index
      %35 = memref.load %arg5[%c1_28, %34] : memref<4x2xf32, #tpu.memory_space<smem>>
      %c2 = arith.constant 2 : index
      %36 = arith.index_cast %arg10 : i32 to index
      %37 = memref.load %arg5[%c2, %36] : memref<4x2xf32, #tpu.memory_space<smem>>
      %c3 = arith.constant 3 : index
      %38 = arith.index_cast %arg10 : i32 to index
      %39 = memref.load %arg5[%c3, %38] : memref<4x2xf32, #tpu.memory_space<smem>>
      %40 = vector.broadcast %33 : f32 to vector<8x128xf32>
      %41 = arith.subf %1, %40 : vector<8x128xf32>
      %42 = vector.broadcast %35 : f32 to vector<8x128xf32>
      %43 = arith.subf %3, %42 : vector<8x128xf32>
      %44 = arith.mulf %41, %41 : vector<8x128xf32>
      %45 = arith.mulf %43, %43 : vector<8x128xf32>
      %46 = arith.addf %44, %45 : vector<8x128xf32>
      %47 = vector.broadcast %cst_13 : f32 to vector<8x128xf32>
      %48 = arith.addf %46, %47 : vector<8x128xf32>
      %49 = math.log %48 : vector<8x128xf32>
      %50 = vector.broadcast %39 : f32 to vector<8x128xf32>
      %51 = arith.mulf %50, %49 : vector<8x128xf32>
      %52 = math.exp %51 : vector<8x128xf32>
      %53 = vector.broadcast %37 : f32 to vector<8x128xf32>
      %54 = arith.mulf %53, %52 : vector<8x128xf32>
      %c0_29 = arith.constant 0 : index
      %c0_30 = arith.constant 0 : index
      %55 = vector.load %arg8[%c0_29, %c0_30] : memref<8x128xf32, #tpu.memory_space<vmem>>, vector<8x128xf32>
      %56 = arith.mulf %54, %41 : vector<8x128xf32>
      %57 = arith.addf %55, %56 : vector<8x128xf32>
      %c0_31 = arith.constant 0 : index
      %c0_32 = arith.constant 0 : index
      %58 = vector.load %arg8[%c0_31, %c0_32] : memref<8x128xf32, #tpu.memory_space<vmem>>, vector<8x128xf32>
      tpu.vector_store %arg8[%c0_31, %c0_32], %57 {strides = array<i32>} : memref<8x128xf32, #tpu.memory_space<vmem>>, vector<8x128xf32>,
      %c0_33 = arith.constant 0 : index
      %c0_34 = arith.constant 0 : index
      %59 = vector.load %arg9[%c0_33, %c0_34] : memref<8x128xf32, #tpu.memory_space<vmem>>, vector<8x128xf32>
      %60 = arith.mulf %54, %43 : vector<8x128xf32>
      %61 = arith.addf %59, %60 : vector<8x128xf32>
      %c0_35 = arith.constant 0 : index
      %c0_36 = arith.constant 0 : index
      %62 = vector.load %arg9[%c0_35, %c0_36] : memref<8x128xf32, #tpu.memory_space<vmem>>, vector<8x128xf32>
      tpu.vector_store %arg9[%c0_35, %c0_36], %61 {strides = array<i32>} : memref<8x128xf32, #tpu.memory_space<vmem>>, vector<8x128xf32>,
    }
    %c0_15 = arith.constant 0 : index
    %c0_16 = arith.constant 0 : index
    %22 = vector.load %arg8[%c0_15, %c0_16] : memref<8x128xf32, #tpu.memory_space<vmem>>, vector<8x128xf32>
    %23 = arith.subf %1, %22 : vector<8x128xf32>
    %c0_17 = arith.constant 0 : index
    %c0_18 = arith.constant 0 : index
    %c0_19 = arith.constant 0 : index
    %c0_20 = arith.constant 0 : index
    %24 = vector.load %arg7[%c0_17, %c0_18, %c0_19, %c0_20] : memref<1x2x8x128xf32, #tpu.memory_space<vmem>>, vector<1x1x8x128xf32>
    %25 = vector.shape_cast %24 : vector<1x1x8x128xf32> to vector<8x128xf32>
    %26 = vector.shape_cast %23 : vector<8x128xf32> to vector<1x1x8x128xf32>
    tpu.vector_store %arg7[%c0_17, %c0_18, %c0_19, %c0_20], %26 {strides = array<i32>} : memref<1x2x8x128xf32, #tpu.memory_space<vmem>>, vector<1x1x8x128xf32>,
    %c0_21 = arith.constant 0 : index
    %c0_22 = arith.constant 0 : index
    %27 = vector.load %arg9[%c0_21, %c0_22] : memref<8x128xf32, #tpu.memory_space<vmem>>, vector<8x128xf32>
    %28 = arith.subf %3, %27 : vector<8x128xf32>
    %c0_23 = arith.constant 0 : index
    %c1_24 = arith.constant 1 : index
    %c0_25 = arith.constant 0 : index
    %c0_26 = arith.constant 0 : index
    %29 = vector.load %arg7[%c0_23, %c1_24, %c0_25, %c0_26] : memref<1x2x8x128xf32, #tpu.memory_space<vmem>>, vector<1x1x8x128xf32>
    %30 = vector.shape_cast %29 : vector<1x1x8x128xf32> to vector<8x128xf32>
    %31 = vector.shape_cast %28 : vector<8x128xf32> to vector<1x1x8x128xf32>
    tpu.vector_store %arg7[%c0_23, %c1_24, %c0_25, %c0_26], %31 {strides = array<i32>} : memref<1x2x8x128xf32, #tpu.memory_space<vmem>>, vector<1x1x8x128xf32>,
    return
  }
  func.func @transform_0(%arg0: i32, %arg1: i32) -> i32 {
    %c0_i32 = arith.constant 0 : i32
    %c0_i32_0 = arith.constant 0 : i32
    return %c0_i32 : i32
  }
  func.func @transform_1(%arg0: i32, %arg1: i32) -> i32 {
    %c0_i32 = arith.constant 0 : i32
    %c0_i32_0 = arith.constant 0 : i32
    return %c0_i32 : i32
  }
  func.func @transform_2(%arg0: i32, %arg1: i32) -> (i32, i32) {
    %c0_i32 = arith.constant 0 : i32
    %c0_i32_0 = arith.constant 0 : i32
    %c0_i32_1 = arith.constant 0 : i32
    return %c0_i32, %c0_i32_0 : i32, i32
  }
  func.func @transform_3(%arg0: i32, %arg1: i32) -> (i32, i32) {
    %c0_i32 = arith.constant 0 : i32
    %c0_i32_0 = arith.constant 0 : i32
    %c0_i32_1 = arith.constant 0 : i32
    return %c0_i32, %c0_i32_0 : i32, i32
  }
  func.func @transform_4(%arg0: i32, %arg1: i32) -> (i32, i32, i32) {
    %c0_i32 = arith.constant 0 : i32
    %c0_i32_0 = arith.constant 0 : i32
    %c0_i32_1 = arith.constant 0 : i32
    return %c0_i32, %arg0, %c0_i32_0 : i32, i32, i32
  }
  func.func @transform_5(%arg0: i32, %arg1: i32) -> (i32, i32, i32, i32) {
    %c0_i32 = arith.constant 0 : i32
    %c0_i32_0 = arith.constant 0 : i32
    %c0_i32_1 = arith.constant 0 : i32
    return %arg1, %c0_i32, %arg0, %c0_i32_0 : i32, i32, i32, i32
  }
}

</mosaic_0001>

<llo_original>
// kernel: tpu_custom_call.1
$region0: #{tpu_custom_call.1}
  #allocation0 [shape = 'u32[]', space=smem, size = 0x4, offset = 0x4, fixed_abs, tag = 'smem constant byte address 0x4 - core index']
  #allocation1 [shape = 'u32[144,128]{1,0:T(1,128)}', space=vmem, size = 0x12000, scoped, tag = 'internal scratch']
  #allocation2 [shape = 'f32[8,128]{1,0:T(8,128)}', space=vmem, size = 0x1000, scoped, tag = 'scratch operand']
  #allocation3 [shape = 'f32[8,128]{1,0:T(8,128)}', space=vmem, size = 0x1000, scoped, tag = 'scratch operand']
  %s0 = inlined_call_operand.vmem [shape: s32[5], index: 0, kind: input, shape index: {}]
  %s1 = inlined_call_operand.vmem [shape: s32[5], index: 1, kind: input, shape index: {}]
  %s2 = inlined_call_operand.vmem [shape: f32[3,3], index: 2, kind: input, shape index: {}]
  %s3 = inlined_call_operand.vmem [shape: f32[4,2], index: 3, kind: input, shape index: {}]
  %s4 = inlined_call_operand.hbm [shape: f32[2,8,128], index: 4, kind: input, shape index: {}]
  %s5 = inlined_call_operand.hbm [shape: f32[4,2,8,128], index: 5, kind: output, shape index: {}]
  %s6 = sld [smem:[#allocation0]]
  $region87: #{tpu_custom_call.1} parent=0
    _
  %s8 = ssub.s32 1, %s6
  %s9 = scalar_select 0, %s8, %s6
  $region1: #{tpu_custom_call.1} parent=0
    #allocation4 [shape = 'u8[512]{0}', space=smem, size = 0x200, scoped, tag = 'input window, operand 0, single buffered']
    #allocation5 [shape = 's32[2]{0}', space=sflag, size = 0x8, scoped, tag = 'scoped memory for tpu_custom_call.1']
    #allocation6 [shape = 's32[2]{0}', space=sflag, size = 0x8, scoped, tag = 'scoped memory for tpu_custom_call.1']
    #allocation7 [shape = 's32[2]{0}', space=sflag, size = 0x8, scoped, tag = 'scoped memory for tpu_custom_call.1']
    #allocation8 [shape = 'u8[512]{0}', space=smem, size = 0x200, scoped, tag = 'input window, operand 1, single buffered']
    #allocation9 [shape = 's32[1]{0}', space=sflag, size = 0x4, scoped, tag = 'scoped memory for tpu_custom_call.1']
    #allocation10 [shape = 'u8[2048]{0}', space=smem, size = 0x800, scoped, tag = 'input window, operand 2, single buffered']
    #allocation11 [shape = 'u8[2048]{0}', space=smem, size = 0x800, scoped, tag = 'input window, operand 3, single buffered']
    #allocation12 [shape = 's32[1]{0}', space=sflag, size = 0x4, scoped, tag = 'scoped memory for tpu_custom_call.1']
    #allocation13 [shape = 'u8[8192]{0}', space=vmem, size = 0x2000, scoped, tag = 'input window, operand 4, single buffered']
    #allocation14 [shape = 'u8[16384]{0}', space=vmem, size = 0x4000, scoped, tag = 'output window, operand 0']
    %10 = vsyncpa [#allocation7], 0
    %11 = vsyncpa [#allocation9], 0
    %12 = vsyncpa [#allocation12], 0
    %13 = vsyncpa [#allocation5], 0
    %14 = vsyncpa [#allocation6], 0
    %s15 = scalar_lea.sflag [#allocation6], 1
    %16 = vsyncpa %s15, 0
    loop: start=0, step=1, limit=6
    $region2: #{tpu_custom_call.1} parent=1 // loop_pre_header
      _
    $region3: #{tpu_custom_call.1} parent=1 // loop_header
      %s18 = sphi 0, %s22
      %p19 = scmp.ge.s32.totalorder %s18, 6
      %s25 = sphi 0, %s37
      %s26 = sphi 0, %s33
      %s27 = sphi 0, %s25
      %s28 = sphi 0, %s26
      %s29 = sphi 0, %s27
      %s30 = sphi 0, %s28
      %s38 = sphi 0, %s38
      %s40 = sphi 0, %s38
      %s41 = sphi 0, %s40
      %s55 = sphi 0, %s41
      %s59 = sphi 0, %s59
      %s61 = sphi 0, %s59
      %s62 = sphi 0, %s61
      %s76 = sphi 0, %s62
      %s80 = sphi 0, %s80
      %s82 = sphi 0, %s80
      %s83 = sphi 0, %s82
      %s97 = sphi 0, %s83
      %s101 = sphi 0, %s101
      %s103 = sphi 0, %s101
      %s104 = sphi 0, %s103
      %s118 = sphi 0, %s104
      %s124 = sphi 0, %s126
      %s127 = sphi 0, %s124
      %s128 = sphi 0, %s127
      %s144 = sphi 0, %s128
      %s152 = sphi 0, %s154
      %s155 = sphi 0, %s152
      %s156 = sphi 0, %s155
      %s172 = sphi 0, %s156
    $region4: #{tpu_custom_call.1} parent=1 // loop_header_branch
      %21 = sbr.rel (%p19) target = $region8
    $region5: #{tpu_custom_call.1} parent=1 // loop_body
      %s23 = ssub.s32 %s18, 1
      %s24 = ssub.s32 %s18, 2
      %s31 = sadd.s32 1, %s26
      %p32 = scmp.ge.s32.totalorder %s31, 4
      %s33 = scalar_select %p32, 0, %s31
      %s34 = sadd.s32 1, %s25
      %s35 = scalar_select %p32, %s34, %s25
      %p36 = scmp.ge.s32.totalorder %s35, 1
      %s37 = scalar_select %p36, 0, %s35
      %s39 = sadd.s32 %s38, 1
      %p42 = scmp.eq.s32.totalorder %s18, 3
      %p43 = scmp.ne.s32.totalorder %s38, %s40
      %p44 = scmp.eq.s32.totalorder %s18, 0
      %p45 = por %p43, %p44
      %p46 = scmp.ne.s32.totalorder %s38, %s40
      %p47 = scmp.eq.s32.totalorder %s23, 3
      %p48 = por %p46, %p47
      %p49 = scmp.ne.s32.totalorder %s40, %s41
      %p50 = scmp.eq.s32.totalorder %s23, 0
      %p51 = por %p49, %p50
      %p52 = scmp.ne.s32.totalorder %s40, %s41
      %p53 = scmp.eq.s32.totalorder %s24, 3
      %p54 = por %p52, %p53
      %p56 = scmp.ne.s32.totalorder %s41, %s55
      %p57 = scmp.eq.s32.totalorder %s24, 0
      %p58 = por %p56, %p57
      %s60 = sadd.s32 %s59, 1
      %p63 = scmp.eq.s32.totalorder %s18, 3
      %p64 = scmp.ne.s32.totalorder %s59, %s61
      %p65 = scmp.eq.s32.totalorder %s18, 0
      %p66 = por %p64, %p65
      %p67 = scmp.ne.s32.totalorder %s59, %s61
      %p68 = scmp.eq.s32.totalorder %s23, 3
      %p69 = por %p67, %p68
      %p70 = scmp.ne.s32.totalorder %s61, %s62
      %p71 = scmp.eq.s32.totalorder %s23, 0
      %p72 = por %p70, %p71
      %p73 = scmp.ne.s32.totalorder %s61, %s62
      %p74 = scmp.eq.s32.totalorder %s24, 3
      %p75 = por %p73, %p74
      %p77 = scmp.ne.s32.totalorder %s62, %s76
      %p78 = scmp.eq.s32.totalorder %s24, 0
      %p79 = por %p77, %p78
      %s81 = sadd.s32 %s80, 1
      %p84 = scmp.eq.s32.totalorder %s18, 3
      %p85 = scmp.ne.s32.totalorder %s80, %s82
      %p86 = scmp.eq.s32.totalorder %s18, 0
      %p87 = por %p85, %p86
      %p88 = scmp.ne.s32.totalorder %s80, %s82
      %p89 = scmp.eq.s32.totalorder %s23, 3
      %p90 = por %p88, %p89
      %p91 = scmp.ne.s32.totalorder %s82, %s83
      %p92 = scmp.eq.s32.totalorder %s23, 0
      %p93 = por %p91, %p92
      %p94 = scmp.ne.s32.totalorder %s82, %s83
      %p95 = scmp.eq.s32.totalorder %s24, 3
      %p96 = por %p94, %p95
      %p98 = scmp.ne.s32.totalorder %s83, %s97
      %p99 = scmp.eq.s32.totalorder %s24, 0
      %p100 = por %p98, %p99
      %s102 = sadd.s32 %s101, 1
      %p105 = scmp.eq.s32.totalorder %s18, 3
      %p106 = scmp.ne.s32.totalorder %s101, %s103
      %p107 = scmp.eq.s32.totalorder %s18, 0
      %p108 = por %p106, %p107
      %p109 = scmp.ne.s32.totalorder %s101, %s103
      %p110 = scmp.eq.s32.totalorder %s23, 3
      %p111 = por %p109, %p110
      %p112 = scmp.ne.s32.totalorder %s103, %s104
      %p113 = scmp.eq.s32.totalorder %s23, 0
      %p114 = por %p112, %p113
      %p115 = scmp.ne.s32.totalorder %s103, %s104
      %p116 = scmp.eq.s32.totalorder %s24, 3
      %p117 = por %p115, %p116
      %p119 = scmp.ne.s32.totalorder %s104, %s118
      %p120 = scmp.eq.s32.totalorder %s24, 0
      %p121 = por %p119, %p120
      %s122 = ssub.s32 %s25, %s37
      %p123 = scmp.eq.s32.totalorder %s122, 0
      %s125 = sadd.s32 %s124, 1
      %s126 = scalar_select %p123, %s124, %s125
      %p129 = pneg %p123
      %p130 = scmp.eq.s32.totalorder %s18, 3
      %p131 = por %p129, %p130
      %p132 = scmp.ne.s32.totalorder %s124, %s127
      %p133 = scmp.eq.s32.totalorder %s18, 0
      %p134 = por %p132, %p133
      %p135 = scmp.ne.s32.totalorder %s124, %s127
      %p136 = scmp.eq.s32.totalorder %s23, 3
      %p137 = por %p135, %p136
      %p138 = scmp.ne.s32.totalorder %s127, %s128
      %p139 = scmp.eq.s32.totalorder %s23, 0
      %p140 = por %p138, %p139
      %p141 = scmp.ne.s32.totalorder %s127, %s128
      %p142 = scmp.eq.s32.totalorder %s24, 3
      %p143 = por %p141, %p142
      %p145 = scmp.ne.s32.totalorder %s128, %s144
      %p146 = scmp.eq.s32.totalorder %s24, 0
      %p147 = por %p145, %p146
      %s148 = ssub.s32 %s26, %s33
      %s149 = ssub.s32 %s25, %s37
      %s150 = sor.u32 %s148, %s149
      %p151 = scmp.eq.s32.totalorder %s150, 0
      %s153 = sadd.s32 %s152, 1
      %s154 = scalar_select %p151, %s152, %s153
      %p157 = pneg %p151
      %p158 = scmp.eq.s32.totalorder %s18, 3
      %p159 = por %p157, %p158
      %p160 = scmp.ne.s32.totalorder %s152, %s155
      %p161 = scmp.eq.s32.totalorder %s18, 0
      %p162 = por %p160, %p161
      %p163 = scmp.ne.s32.totalorder %s152, %s155
      %p164 = scmp.eq.s32.totalorder %s23, 3
      %p165 = por %p163, %p164
      %p166 = scmp.ne.s32.totalorder %s155, %s156
      %p167 = scmp.eq.s32.totalorder %s23, 0
      %p168 = por %p166, %p167
      %p169 = scmp.ne.s32.totalorder %s155, %s156
      %p170 = scmp.eq.s32.totalorder %s24, 3
      %p171 = por %p169, %p170
      %p173 = scmp.ne.s32.totalorder %s156, %s172
      %p174 = scmp.eq.s32.totalorder %s24, 0
      %p175 = por %p173, %p174
      %p176 = scmp.le.s32.totalorder 1, %s18
      %p177 = scmp.lt.s32.totalorder %s18, 5
      %p178 = pnand %p176, %p177
      %p179 = pneg %p178
      // Predicated region
      $region9: #{tpu_custom_call.1} parent=5 // pred_check
        _
      $region10: #{tpu_custom_call.1} parent=5 // pred_check_branch
        %181 = sbr.rel (%p178) target = $region12
      $region11: #{tpu_custom_call.1} parent=5 // pred_region
        %s182 = ssub.s32 %s18, 1
        // Predicated region
        $region13: #{tpu_custom_call.1} parent=11 // pred_check
          %p183 = pneg %p51
        $region14: #{tpu_custom_call.1} parent=11 // pred_check_branch
          %185 = sbr.rel (%p183) target = $region16
        $region15: #{tpu_custom_call.1} parent=11 // pred_region
          %s187 = ssub.s32 16, 16
          %188 = vsyncadd [#allocation7], %s187
          %s190 = sshll.u32 %s0, 4
          %s191 = int_to_ptr.vmem [resolvable:$true] %s190
          %193 = dma.vmem_to_smem %s191, 16, [#allocation4], [#allocation7]
        $region16: #{tpu_custom_call.1} parent=11 // pred_fallthru
          _
        // Predicated region
        $region17: #{tpu_custom_call.1} parent=11 // pred_check
          %p194 = pneg %p72
        $region18: #{tpu_custom_call.1} parent=11 // pred_check_branch
          %196 = sbr.rel (%p194) target = $region20
        $region19: #{tpu_custom_call.1} parent=11 // pred_region
          %s198 = ssub.s32 16, 16
          %199 = vsyncadd [#allocation9], %s198
          %s201 = sshll.u32 %s1, 4
          %s202 = int_to_ptr.vmem [resolvable:$true] %s201
          %204 = dma.vmem_to_smem %s202, 16, [#allocation8], [#allocation9]
        $region20: #{tpu_custom_call.1} parent=11 // pred_fallthru
          _
        // Predicated region
        $region21: #{tpu_custom_call.1} parent=11 // pred_check
          %p205 = pneg %p93
        $region22: #{tpu_custom_call.1} parent=11 // pred_check_branch
          %207 = sbr.rel (%p205) target = $region24
        $region23: #{tpu_custom_call.1} parent=11 // pred_region
          %s209 = ssub.s32 64, 64
          %210 = vsyncadd [#allocation9], %s209
          %s212 = sshll.u32 %s2, 4
          %s213 = int_to_ptr.vmem [resolvable:$true] %s212
          %215 = dma.vmem_to_smem %s213, 64, [#allocation10], [#allocation9]
        $region24: #{tpu_custom_call.1} parent=11 // pred_fallthru
          _
        // Predicated region
        $region25: #{tpu_custom_call.1} parent=11 // pred_check
          %p216 = pneg %p114
        $region26: #{tpu_custom_call.1} parent=11 // pred_check_branch
          %218 = sbr.rel (%p216) target = $region28
        $region27: #{tpu_custom_call.1} parent=11 // pred_region
          %s220 = ssub.s32 64, 64
          %221 = vsyncadd [#allocation12], %s220
          %s223 = sshll.u32 %s3, 4
          %s224 = int_to_ptr.vmem [resolvable:$true] %s223
          %226 = dma.vmem_to_smem %s224, 64, [#allocation11], [#allocation12]
        $region28: #{tpu_custom_call.1} parent=11 // pred_fallthru
          _
        // Predicated region
        $region29: #{tpu_custom_call.1} parent=11 // pred_check
          %p227 = pneg %p140
        $region30: #{tpu_custom_call.1} parent=11 // pred_check_branch
          %229 = sbr.rel (%p227) target = $region32
        $region31: #{tpu_custom_call.1} parent=11 // pred_region
          %s231 = ssub.s32 256, 256
          %232 = vsyncadd [#allocation5], %s231
          %s233 = smul.addr %s27, 128
          %s234 = scalar_lea.hbm %s4, %s233
          %s235 = sshll.u32 [#allocation13], 4
          %s236 = int_to_ptr.vmem [resolvable:$true] %s235
          %241 = dma.hbm_to_vmem [thread:$0]  %s234, 256, %s236, [#allocation5], 128, 128, 8
        $region32: #{tpu_custom_call.1} parent=11 // pred_fallthru
          _
      $region12: #{tpu_custom_call.1} parent=5 // pred_fallthru
        _
      %p242 = scmp.lt.s32.totalorder %s18, 4
      // Predicated region
      $region33: #{tpu_custom_call.1} parent=5 // pred_check
        %p243 = pneg %p242
      $region34: #{tpu_custom_call.1} parent=5 // pred_check_branch
        %245 = sbr.rel (%p243) target = $region36
      $region35: #{tpu_custom_call.1} parent=5 // pred_region
        _
      $region36: #{tpu_custom_call.1} parent=5 // pred_fallthru
        _
      %p246 = scmp.le.s32.totalorder 1, %s18
      %p247 = scmp.lt.s32.totalorder %s18, 5
      %p248 = pnand %p246, %p247
      %p249 = pneg %p248
      // Predicated region
      $region37: #{tpu_custom_call.1} parent=5 // pred_check
        _
      $region38: #{tpu_custom_call.1} parent=5 // pred_check_branch
        %251 = sbr.rel (%p248) target = $region40
      $region39: #{tpu_custom_call.1} parent=5 // pred_region
        %s252 = ssub.s32 %s18, 1
        // Predicated region
        $region41: #{tpu_custom_call.1} parent=39 // pred_check
          %p253 = pneg %p51
        $region42: #{tpu_custom_call.1} parent=39 // pred_check_branch
          %255 = sbr.rel (%p253) target = $region44
        $region43: #{tpu_custom_call.1} parent=39 // pred_region
          %256 = dma.done [#allocation7], 16
        $region44: #{tpu_custom_call.1} parent=39 // pred_fallthru
          _
        // Predicated region
        $region45: #{tpu_custom_call.1} parent=39 // pred_check
          %p257 = pneg %p72
        $region46: #{tpu_custom_call.1} parent=39 // pred_check_branch
          %259 = sbr.rel (%p257) target = $region48
        $region47: #{tpu_custom_call.1} parent=39 // pred_region
          %260 = dma.done [#allocation9], 16
        $region48: #{tpu_custom_call.1} parent=39 // pred_fallthru
          _
        // Predicated region
        $region49: #{tpu_custom_call.1} parent=39 // pred_check
          %p261 = pneg %p93
        $region50: #{tpu_custom_call.1} parent=39 // pred_check_branch
          %263 = sbr.rel (%p261) target = $region52
        $region51: #{tpu_custom_call.1} parent=39 // pred_region
          %264 = dma.done [#allocation9], 64
        $region52: #{tpu_custom_call.1} parent=39 // pred_fallthru
          _
        // Predicated region
        $region53: #{tpu_custom_call.1} parent=39 // pred_check
          %p265 = pneg %p114
        $region54: #{tpu_custom_call.1} parent=39 // pred_check_branch
          %267 = sbr.rel (%p265) target = $region56
        $region55: #{tpu_custom_call.1} parent=39 // pred_region
          %268 = dma.done [#allocation12], 64
        $region56: #{tpu_custom_call.1} parent=39 // pred_fallthru
          _
        // Predicated region
        $region57: #{tpu_custom_call.1} parent=39 // pred_check
          %p269 = pneg %p140
        $region58: #{tpu_custom_call.1} parent=39 // pred_check_branch
          %271 = sbr.rel (%p269) target = $region60
        $region59: #{tpu_custom_call.1} parent=39 // pred_region
          %272 = dma.done [#allocation5], 256
        $region60: #{tpu_custom_call.1} parent=39 // pred_fallthru
          _
        %273 = sfence
        %p274 = pneg %p51
        %p275 = pneg %p48
        %p276 = pneg %p72
        %p277 = pneg %p69
        %p278 = pneg %p93
        %p279 = pneg %p90
        %p280 = pneg %p114
        %p281 = pneg %p111
        %p282 = pneg %p140
        %p283 = pneg %p137
        %p284 = pneg %p168
        %p285 = pneg %p165
        %s286 = sand.u32 %s155, 1
        %s287 = scalar_lea.sflag [#allocation6], %s286
        %s288 = sand.u32 %s155, 1
        %s289 = smul.addr %s288, 16
        %s290 = scalar_lea.vmem [#allocation14], %s289
        %v291 = vld [vmem:[#allocation13] sm:$0xff]
        %s292 = scalar_lea.vmem [#allocation13], 8
        %v293 = vld [vmem:[%s292] sm:$0xff]
        %294 = vst [vmem:[#allocation2] sm:$0xff] 0.0
        %295 = vst [vmem:[#allocation3] sm:$0xff] 0.0
        %s296 = sld [smem:[#allocation4 + %s28]]
        %s297 = sadd.s32 %s28, 1
        %s298 = sld [smem:[#allocation4 + %s297]]
        // While loop
        $region61: #{tpu_custom_call.1} parent=39 // loop_pre_header
          _
        $region62: #{tpu_custom_call.1} parent=39 // loop_header
          %s300 = sphi %s296, %s302
          %p301 = scmp.ge.s32.totalorder %s300, %s298
        $region63: #{tpu_custom_call.1} parent=39 // loop_header_branch
          %304 = sbr.rel (%p301) target = $region67
        $region64: #{tpu_custom_call.1} parent=39 // loop_body
          %s305 = sld [smem:[#allocation10 + %s300]]
          %s306 = sshra.s32 %s300, 7
          %s307 = sand.u32 %s300, 127
          %s308 = sadd.s32 %s306, 1
          %s309 = smul.u32 %s308, 128
          %s310 = sshra.s32 %s300, 7
          %s311 = sand.u32 %s300, 127
          %s312 = sadd.s32 %s309, %s311
          %s313 = sld [smem:[#allocation10 + %s312]]
          %s314 = sadd.s32 %s306, 2
          %s315 = smul.u32 %s314, 128
          %s316 = sadd.s32 %s315, %s311
          %s317 = sld [smem:[#allocation10 + %s316]]
          %v318 = vstv %s305
          %v319 = vsub.f32 %v291, %v318
          %v320 = vstv %s313
          %v321 = vsub.f32 %v293, %v320
          %v322 = vmul.f32 %v319, %v319
          %v323 = vmul.f32 %v321, %v321
          %v324 = vadd.f32 %v322, %v323
          %v325 = vadd.f32 %v324, 1e-12
          %v326 = vrsqrt.pop %v325
          %v327 = vstv %s317
          %v328 = vmul.f32 %v327, %v326
          %v329 = vld [vmem:[#allocation2] sm:$0xff]
          %v330 = vmul.f32 %v328, %v319
          %v331 = vadd.f32 %v329, %v330
          %332 = vst [vmem:[#allocation2] sm:$0xff] %v331
          %v333 = vld [vmem:[#allocation3] sm:$0xff]
          %v334 = vmul.f32 %v328, %v321
          %v335 = vadd.f32 %v333, %v334
          %336 = vst [vmem:[#allocation3] sm:$0xff] %v335
        $region65: #{tpu_custom_call.1} parent=39 // loop_footer
          %s302 = sadd.s32 %s300, 1
        $region66: #{tpu_custom_call.1} parent=39 // loop_footer_branch
          %299 = sbr.rel target = $region62
        $region67: #{tpu_custom_call.1} parent=39 // loop_exit
          _
        %s337 = sld [smem:[#allocation8 + %s28]]
        %s338 = sld [smem:[#allocation8 + %s297]]
        // While loop
        $region68: #{tpu_custom_call.1} parent=39 // loop_pre_header
          _
        $region69: #{tpu_custom_call.1} parent=39 // loop_header
          %s340 = sphi %s337, %s342
          %p341 = scmp.ge.s32.totalorder %s340, %s338
        $region70: #{tpu_custom_call.1} parent=39 // loop_header_branch
          %344 = sbr.rel (%p341) target = $region74
        $region71: #{tpu_custom_call.1} parent=39 // loop_body
          %s345 = sld [smem:[#allocation11 + %s340]]
          %s346 = sshra.s32 %s340, 7
          %s347 = sand.u32 %s340, 127
          %s348 = sadd.s32 %s346, 1
          %s349 = smul.u32 %s348, 128
          %s350 = sshra.s32 %s340, 7
          %s351 = sand.u32 %s340, 127
          %s352 = sadd.s32 %s349, %s351
          %s353 = sld [smem:[#allocation11 + %s352]]
          %s354 = sadd.s32 %s346, 2
          %s355 = smul.u32 %s354, 128
          %s356 = sadd.s32 %s355, %s351
          %s357 = sld [smem:[#allocation11 + %s356]]
          %s358 = sadd.s32 %s346, 3
          %s359 = smul.u32 %s358, 128
          %s360 = sadd.s32 %s359, %s351
          %s361 = sld [smem:[#allocation11 + %s360]]
          %v362 = vstv %s345
          %v363 = vsub.f32 %v291, %v362
          %v364 = vstv %s353
          %v365 = vsub.f32 %v293, %v364
          %v366 = vmul.f32 %v363, %v363
          %v367 = vmul.f32 %v365, %v365
          %v368 = vadd.f32 %v366, %v367
          %v369 = vadd.f32 %v368, 1e-12
          %v370 = vlog2.pop %v369
          %v371 = vmul.f32 %v370, 0.6931472
          %v372 = vstv %s361
          %v373 = vmul.f32 %v372, %v371
          %v374 = vmul.f32 %v373, 1.442695
          %v375 = vpow.pop %v374
          %v376 = vstv %s357
          %v377 = vmul.f32 %v376, %v375
          %v378 = vld [vmem:[#allocation2] sm:$0xff]
          %v379 = vmul.f32 %v377, %v363
          %v380 = vadd.f32 %v378, %v379
          %381 = vst [vmem:[#allocation2] sm:$0xff] %v380
          %v382 = vld [vmem:[#allocation3] sm:$0xff]
          %v383 = vmul.f32 %v377, %v365
          %v384 = vadd.f32 %v382, %v383
          %385 = vst [vmem:[#allocation3] sm:$0xff] %v384
        $region72: #{tpu_custom_call.1} parent=39 // loop_footer
          %s342 = sadd.s32 %s340, 1
        $region73: #{tpu_custom_call.1} parent=39 // loop_footer_branch
          %339 = sbr.rel target = $region69
        $region74: #{tpu_custom_call.1} parent=39 // loop_exit
          _
        %v386 = vld [vmem:[#allocation2] sm:$0xff]
        %v387 = vsub.f32 %v291, %v386
        %388 = vst [vmem:[%s290] sm:$0xff] %v387
        %v389 = vld [vmem:[#allocation3] sm:$0xff]
        %v390 = vsub.f32 %v293, %v389
        %s391 = scalar_lea.vmem %s290, 8 [#allocation14]
        %392 = vst [vmem:[%s391] sm:$0xff] %v390
        %s393 = sand.u32 %s155, 1
        %s394 = scalar_lea.sflag [#allocation6], %s393
        %s395 = sand.u32 %s155, 1
        %s396 = smul.addr %s395, 16
        %s397 = scalar_lea.vmem [#allocation14], %s396
        // Predicated region
        $region75: #{tpu_custom_call.1} parent=39 // pred_check
          %p398 = pneg %p165
        $region76: #{tpu_custom_call.1} parent=39 // pred_check_branch
          %400 = sbr.rel (%p398) target = $region78
        $region77: #{tpu_custom_call.1} parent=39 // pred_region
          %s402 = ssub.s32 256, 256
          %403 = vsyncadd %s394, %s402
          %s404 = smul.addr %s28, 2
          %s405 = sadd.s32 %s27, %s404
          %s406 = smul.addr %s405, 128
          %s407 = scalar_lea.hbm %s5, %s406
          %s408 = sshll.u32 %s397, 4
          %s409 = int_to_ptr.vmem [resolvable:$true] %s408
          %414 = dma.vmem_to_hbm [thread:$0]  %s409, 256, %s407, %s394, 128, 128, 8
        $region78: #{tpu_custom_call.1} parent=39 // pred_fallthru
          _
      $region40: #{tpu_custom_call.1} parent=5 // pred_fallthru
        _
      %p415 = scmp.le.s32.totalorder 2, %s18
      // Predicated region
      $region79: #{tpu_custom_call.1} parent=5 // pred_check
        %p416 = pneg %p415
      $region80: #{tpu_custom_call.1} parent=5 // pred_check_branch
        %418 = sbr.rel (%p416) target = $region82
      $region81: #{tpu_custom_call.1} parent=5 // pred_region
        %s419 = ssub.s32 %s18, 2
        // Predicated region
        $region83: #{tpu_custom_call.1} parent=81 // pred_check
          %p420 = pneg %p171
        $region84: #{tpu_custom_call.1} parent=81 // pred_check_branch
          %422 = sbr.rel (%p420) target = $region86
        $region85: #{tpu_custom_call.1} parent=81 // pred_region
          %s423 = sand.u32 %s156, 1
          %s424 = scalar_lea.sflag [#allocation6], %s423
          %s425 = sand.u32 %s156, 1
          %s426 = smul.addr %s425, 16
          %s427 = scalar_lea.vmem [#allocation14], %s426
          %428 = dma.done %s424, 256
        $region86: #{tpu_custom_call.1} parent=81 // pred_fallthru
          _
      $region82: #{tpu_custom_call.1} parent=5 // pred_fallthru
        _
    $region6: #{tpu_custom_call.1} parent=1 // loop_footer
      %s22 = sadd.s32 1, %s18
    $region7: #{tpu_custom_call.1} parent=1 // loop_footer_branch
      %17 = sbr.rel target = $region3
    $region8: #{tpu_custom_call.1} parent=1 // loop_exit
      _
    %429 = vsyncpa [#allocation5], 1
    %s430 = scalar_lea.sflag [#allocation5], 1
    %431 = vsyncpa %s430, 1
    %432 = vsyncpa [#allocation6], 1
    %s433 = scalar_lea.sflag [#allocation6], 1
    %434 = vsyncpa %s433, 1
    %435 = vsyncpa [#allocation7], 1
    %s436 = scalar_lea.sflag [#allocation7], 1
    %437 = vsyncpa %s436, 1
    %438 = vsyncpa [#allocation9], 1
    %439 = vsyncpa [#allocation12], 1

</llo_original>
